<compile_context>
chip_gen: v7x
topology: tpu7x:2x2x1
jax: 0.10.0
libtpu: 0.0.40
codegen_flags: <defaults>
</compile_context>

<pallas_src>
import jax
import jax.numpy as jnp
from jax import lax
from jax.experimental import pallas as pl
from jax.experimental.pallas import tpu as pltpu

LANES = 128
GROUP_ROWS = 32                 # rows per fused inner-reduction step (4 f32 vregs)
TARGET_BLOCK_BYTES = 1 << 20    # ~1 MiB of HBM per input per grid step


def _round_up(x, m):
    return ((x + m - 1) // m) * m


def _num_tensorcores():
    """Best-effort TensorCores-per-device (1 on v5e/v6e, 2 on v7x)."""
    try:
        dev = jax.devices()[0]
    except Exception:
        return 1
    for attr in ("num_cores", "core_count", "num_tensorcores"):
        n = getattr(dev, attr, None)
        if isinstance(n, int) and n > 0:
            return n
    try:
        info = pltpu.get_tpu_info()
        for attr in ("num_cores", "core_count", "num_tensorcores",
                     "tensorcore_count", "cores_per_chip"):
            n = getattr(info, attr, None)
            if isinstance(n, int) and n > 0:
                return n
    except Exception:
        pass
    kind = str(getattr(dev, "device_kind", "")).lower()
    if "v7" in kind:
        return 2                # v7x: 2 TensorCores per chip
    return 1


def _dimension_semantics(ncores):
    """Grid-axis semantics for (core_axis, reduction_axis)."""
    if ncores <= 1:
        return ("arbitrary", "arbitrary")
    kind = ""
    try:
        kind = str(getattr(jax.devices()[0], "device_kind", "")).lower()
    except Exception:
        pass
    if "v7" in kind and hasattr(pltpu, "CORE_PARALLEL"):
        # Explicit cross-TensorCore split on v7x (plain "parallel" may not
        # actually shard the grid across the two TCs).
        return (pltpu.CORE_PARALLEL, pltpu.ARBITRARY)
    return ("parallel", "arbitrary")


def _make_sums_kernel(tile_rows, group_rows, bpc, rows_valid, needs_mask,
                      mask_start_blk):
    """Partial-sums kernel: accumulates the 5 raw sums into the resident
    (5, 8, 128) output block for this core strip."""
    n_groups = tile_rows // group_rows
    if n_groups % 4 == 0:
        unroll = 4
    elif n_groups % 2 == 0:
        unroll = 2
    else:
        unroll = 1

    def kernel(x_ref, y_ref, o_ref):
        c = pl.program_id(0)   # core / parallel axis
        j = pl.program_id(1)   # streaming / reduction axis

        @pl.when(j == 0)
        def _init():
            o_ref[...] = jnp.zeros_like(o_ref)

        # UNCLAMPED global block index (the DMA index_map may clamp; the mask
        # below must use the unclamped value so duplicated rows contribute 0).
        gb = c * bpc + j

        def strip_sums(use_mask):
            if use_mask:
                row0 = gb * tile_rows  # global row of this block's first row

            def body(g, accs):
                ax, ay, axy, axx, ayy = accs
                start = pl.multiple_of(g * group_rows, group_rows)
                # Load each chunk once; cast after the DMA so narrow dtypes
                # stream at their native width.
                x = x_ref[pl.ds(start, group_rows), :].astype(jnp.float32)
                y = y_ref[pl.ds(start, group_rows), :].astype(jnp.float32)
                if use_mask:
                    rid = (row0 + start
                           + lax.broadcasted_iota(jnp.int32,
                                                  (group_rows, LANES), 0))
                    valid = rid < rows_valid
                    x = jnp.where(valid, x, 0.0)
                    y = jnp.where(valid, y, 0.0)
                # "auditory" model == clamp(min=0) == ReLU.
                x = jnp.maximum(x, 0.0)
                y = jnp.maximum(y, 0.0)

                def red(v):
                    # (group_rows,128) -> (8,128): elementwise vreg adds only,
                    # no cross-lane XLU work in the hot loop.
                    return jnp.sum(v.reshape(group_rows // 8, 8, LANES), axis=0)

                return (ax + red(x), ay + red(y), axy + red(x * y),
                        axx + red(x * x), ayy + red(y * y))

            zero = jnp.zeros((8, LANES), jnp.float32)
            ax, ay, axy, axx, ayy = lax.fori_loop(
                0, n_groups, body, (zero, zero, zero, zero, zero),
                unroll=unroll)

            # Output block is resident across j (its index only depends on c),
            # so accumulate directly into it — no VMEM scratch needed.
            o_ref[0] += ax      # sum(relu(x))
            o_ref[1] += ay      # sum(relu(y))
            o_ref[2] += axy     # sum(relu(x)*relu(y))
            o_ref[3] += axx     # sum(relu(x)^2)
            o_ref[4] += ayy     # sum(relu(y)^2)

        if needs_mask:
            # Fast unmasked body for all interior blocks; masked body only for
            # the ragged final block and any clamped overshoot block.
            @pl.when(gb < mask_start_blk)
            def _fast():
                strip_sums(False)

            @pl.when(gb >= mask_start_blk)
            def _masked():
                strip_sums(True)
        else:
            strip_sums(False)

    return kernel


def _pemoq_raw_sums_2d(x2d, y2d):
    """Raw sums over a (R, 128) slab. Returns (5,) f32:
    [sum x, sum y, sum xy, sum x^2, sum y^2] with x,y := relu(inputs)."""
    rows = x2d.shape[0]
    itemsize = max(jnp.dtype(x2d.dtype).itemsize, jnp.dtype(y2d.dtype).itemsize)
    max_tile_rows = _round_up(max(512, TARGET_BLOCK_BYTES // (LANES * itemsize)),
                              GROUP_ROWS)

    if rows >= max_tile_rows:
        tile_rows = max_tile_rows
    else:
        # Whole slab in one block; round rows up to a sublane multiple with a
        # tiny (<8 rows) zero pad. Zeros are inert: relu(0) == 0.
        tile_rows = _round_up(rows, 8)
        if tile_rows != rows:
            x2d = jnp.pad(x2d, ((0, tile_rows - rows), (0, 0)))
            y2d = jnp.pad(y2d, ((0, tile_rows - rows), (0, 0)))

    arr_rows = x2d.shape[0]
    nblocks = (arr_rows + tile_rows - 1) // tile_rows
    ncores = max(1, min(_num_tensorcores(), nblocks))
    bpc = (nblocks + ncores - 1) // ncores          # blocks per core strip
    overshoot = ncores * bpc - nblocks              # extra grid cells (multi-core only)
    ragged = (arr_rows % tile_rows) != 0
    needs_mask = ragged or (overshoot != 0)
    mask_start_blk = (nblocks - 1) if ragged else nblocks

    group_rows = GROUP_ROWS if tile_rows % GROUP_ROWS == 0 else 8

    if overshoot:
        def in_index_map(c, j):
            # Keep the DMA window in range; the kernel zeros duplicated rows
            # using the *unclamped* global block index.
            return (jnp.minimum(c * bpc + j, nblocks - 1), 0)
    else:
        def in_index_map(c, j):
            return (c * bpc + j, 0)

    kernel = _make_sums_kernel(tile_rows, group_rows, bpc, rows, needs_mask,
                               mask_start_blk)
    in_spec = pl.BlockSpec((tile_rows, LANES), in_index_map)

    partials = pl.pallas_call(
        kernel,
        out_shape=jax.ShapeDtypeStruct((ncores * 5, 8, LANES), jnp.float32),
        grid_spec=pltpu.PrefetchScalarGridSpec(
            num_scalar_prefetch=0,
            grid=(ncores, bpc),
            in_specs=[in_spec, in_spec],
            out_specs=pl.BlockSpec((5, 8, LANES), lambda c, j: (c, 0, 0)),
        ),
        compiler_params=pltpu.CompilerParams(
            dimension_semantics=_dimension_semantics(ncores),
        ),
    )(x2d, y2d)

    # Single cross-lane reduction of the tiny lane-dense partials slab.
    return jnp.sum(partials.reshape(ncores, 5, 8, LANES), axis=(0, 2, 3))


@jax.jit
def pemoq_loss(predictions, targets):
    if predictions.shape != targets.shape:
        raise ValueError("Input tensors must have the same shape")

    n_elems = predictions.size
    x_flat = predictions.reshape(-1)
    y_flat = targets.reshape(-1)

    n_main = (n_elems // LANES) * LANES
    tail = n_elems - n_main

    sums = jnp.zeros((5,), jnp.float32)
    if n_main > 0:
        if tail == 0:
            x2d = x_flat.reshape(-1, LANES)          # free reshape, no copy
            y2d = y_flat.reshape(-1, LANES)
        else:
            x2d = x_flat[:n_main].reshape(-1, LANES)
            y2d = y_flat[:n_main].reshape(-1, LANES)
        sums = sums + _pemoq_raw_sums_2d(x2d, y2d)

    if tail > 0:
        # Sub-128-element remainder: negligible, folded in with plain jnp.
        xt = jnp.maximum(x_flat[n_main:].astype(jnp.float32), 0.0)
        yt = jnp.maximum(y_flat[n_main:].astype(jnp.float32), 0.0)
        sums = sums + jnp.stack(
            [xt.sum(), yt.sum(), (xt * yt).sum(),
             (xt * xt).sum(), (yt * yt).sum()])

    sx, sy, sxy, sxx, syy = sums[0], sums[1], sums[2], sums[3], sums[4]
    n = jnp.float32(n_elems)
    mx = sx / n
    my = sy / n
    # sum((x-mx)*(y-my)) = sum_xy - N*mx*my  (pad/mask zeros contribute 0).
    numerator = sxy - n * mx * my
    # Clamp: f32 rounding can drive either variance term slightly negative.
    # Per-lane (8x128-way) partial accumulation keeps the raw sums accurate;
    # a fully centered two-pass formulation would be more accurate for extreme
    # N but costs a second pass over HBM.
    var_x = jnp.maximum(sxx - n * mx * mx, 0.0)
    var_y = jnp.maximum(syy - n * my * my, 0.0)
    denominator = jnp.sqrt(var_x * var_y)
    return numerator / (denominator + jnp.float32(1e-8))


def _pemoq_reference(predictions, targets):
    x = jnp.maximum(predictions.astype(jnp.float32), 0.0)
    y = jnp.maximum(targets.astype(jnp.float32), 0.0)
    x = x - x.mean()
    y = y - y.mean()
    num = jnp.sum(x * y)
    den = jnp.sqrt(jnp.sum(x ** 2) * jnp.sum(y ** 2))
    return num / (den + 1e-8)


if __name__ == "__main__":
    key = jax.random.PRNGKey(0)
    k1, k2 = jax.random.split(key)

    # Small NCHW inputs (single-block path).
    preds = jax.random.normal(k1, (2, 4, 16, 16), dtype=jnp.float32)
    targs = jax.random.normal(k2, (2, 4, 16, 16), dtype=jnp.float32)
    out = jax.block_until_ready(pemoq_loss(preds, targs))
    ref = _pemoq_reference(preds, targs)
    assert jnp.allclose(out, ref, atol=1e-5, rtol=1e-5), (out, ref)

    # Larger shape: exercises the multi-block path (resident-output streaming
    # accumulation + pl.when-gated masking of the ragged final block). Looser
    # tolerance: raw-sum Pearson vs centered reference round differently in f32.
    k3, k4 = jax.random.split(k2)
    preds2 = jax.random.normal(k3, (2, 4, 256, 160), dtype=jnp.float32)
    targs2 = jax.random.normal(k4, (2, 4, 256, 160), dtype=jnp.float32)
    out2 = jax.block_until_ready(pemoq_loss(preds2, targs2))
    ref2 = _pemoq_reference(preds2, targs2)
    assert jnp.allclose(out2, ref2, atol=1e-4, rtol=1e-4), (out2, ref2)

    # Odd element count: exercises the <128-lane tail fold-in.
    k5, k6 = jax.random.split(k4)
    preds3 = jax.random.normal(k5, (3, 5, 7, 11), dtype=jnp.float32)
    targs3 = jax.random.normal(k6, (3, 5, 7, 11), dtype=jnp.float32)
    out3 = jax.block_until_ready(pemoq_loss(preds3, targs3))
    ref3 = _pemoq_reference(preds3, targs3)
    assert jnp.allclose(out3, ref3, atol=1e-5, rtol=1e-5), (out3, ref3)

    print("KERNEL_OK")
</pallas_src>

<mosaic_0001>
module attributes {stable_mosaic.version = 11 : i64} {
  func.func @kernel(%arg0: i32, %arg1: i32, %arg2: memref<16x128xf32, #tpu.memory_space<vmem>>, %arg3: memref<16x128xf32, #tpu.memory_space<vmem>>, %arg4: memref<5x8x128xf32, #tpu.memory_space<vmem>>) attributes {dimension_semantics = [#tpu.dimension_semantics<arbitrary>, #tpu.dimension_semantics<arbitrary>], iteration_bounds = array<i64: 1, 1>, scalar_prefetch = 0 : i64, scratch_operands = 0 : i64, tpu.core_type = #tpu.core_type<tc>, window_params = [{transform_indices = @transform_0, window_bounds = array<i64: 16, 128>}, {transform_indices = @transform_1, window_bounds = array<i64: 16, 128>}, {transform_indices = @transform_2, window_bounds = array<i64: 5, 8, 128>}]} {
    %c0_i32 = arith.constant 0 : i32
    %0 = arith.cmpi eq, %arg1, %c0_i32 : i32
    %1 = arith.extui %0 : i1 to i32
    %c0_i32_0 = arith.constant 0 : i32
    %2 = arith.cmpi ne, %1, %c0_i32_0 : i32
    scf.if %2 {
      %cst_46 = arith.constant 0.000000e+00 : f32
      %90 = vector.broadcast %cst_46 : f32 to vector<5x8x128xf32>
      %c0_47 = arith.constant 0 : index
      %c0_48 = arith.constant 0 : index
      %c0_49 = arith.constant 0 : index
      %91 = vector.load %arg4[%c0_47, %c0_48, %c0_49] : memref<5x8x128xf32, #tpu.memory_space<vmem>>, vector<5x8x128xf32>
      tpu.vector_store %arg4[%c0_47, %c0_48, %c0_49], %90 {strides = array<i32>} : memref<5x8x128xf32, #tpu.memory_space<vmem>>, vector<5x8x128xf32>,
    } else {
    }
    %cst = arith.constant 0.000000e+00 : f32
    %3 = vector.broadcast %cst : f32 to vector<8x128xf32>
    %c0_i32_1 = arith.constant 0 : i32
    %c8_i32 = arith.constant 8 : i32
    %4 = arith.muli %c0_i32_1, %c8_i32 : i32
    %5 = tpu.assume_multiple %4, 8 : i32
    %6 = arith.index_cast %5 : i32 to index
    %c0 = arith.constant 0 : index
    %7 = vector.load %arg2[%6, %c0] : memref<16x128xf32, #tpu.memory_space<vmem>>, vector<8x128xf32>
    %8 = arith.index_cast %5 : i32 to index
    %c0_2 = arith.constant 0 : index
    %9 = vector.load %arg3[%8, %c0_2] : memref<16x128xf32, #tpu.memory_space<vmem>>, vector<8x128xf32>
    %cst_3 = arith.constant 0.000000e+00 : f32
    %10 = vector.broadcast %cst_3 : f32 to vector<8x128xf32>
    %11 = arith.maximumf %7, %10 : vector<8x128xf32>
    %cst_4 = arith.constant 0.000000e+00 : f32
    %12 = vector.broadcast %cst_4 : f32 to vector<8x128xf32>
    %13 = arith.maximumf %9, %12 : vector<8x128xf32>
    %14 = vector.shape_cast %11 : vector<8x128xf32> to vector<1x8x128xf32>
    %cst_5 = arith.constant dense<0.000000e+00> : vector<8x128xf32>
    %15 = vector.multi_reduction <add>, %14, %cst_5 [0] : vector<1x8x128xf32> to vector<8x128xf32>
    %16 = arith.addf %3, %15 : vector<8x128xf32>
    %17 = vector.shape_cast %13 : vector<8x128xf32> to vector<1x8x128xf32>
    %cst_6 = arith.constant dense<0.000000e+00> : vector<8x128xf32>
    %18 = vector.multi_reduction <add>, %17, %cst_6 [0] : vector<1x8x128xf32> to vector<8x128xf32>
    %19 = arith.addf %3, %18 : vector<8x128xf32>
    %20 = arith.mulf %11, %13 : vector<8x128xf32>
    %21 = vector.shape_cast %20 : vector<8x128xf32> to vector<1x8x128xf32>
    %cst_7 = arith.constant dense<0.000000e+00> : vector<8x128xf32>
    %22 = vector.multi_reduction <add>, %21, %cst_7 [0] : vector<1x8x128xf32> to vector<8x128xf32>
    %23 = arith.addf %3, %22 : vector<8x128xf32>
    %24 = arith.mulf %11, %11 : vector<8x128xf32>
    %25 = vector.shape_cast %24 : vector<8x128xf32> to vector<1x8x128xf32>
    %cst_8 = arith.constant dense<0.000000e+00> : vector<8x128xf32>
    %26 = vector.multi_reduction <add>, %25, %cst_8 [0] : vector<1x8x128xf32> to vector<8x128xf32>
    %27 = arith.addf %3, %26 : vector<8x128xf32>
    %28 = arith.mulf %13, %13 : vector<8x128xf32>
    %29 = vector.shape_cast %28 : vector<8x128xf32> to vector<1x8x128xf32>
    %cst_9 = arith.constant dense<0.000000e+00> : vector<8x128xf32>
    %30 = vector.multi_reduction <add>, %29, %cst_9 [0] : vector<1x8x128xf32> to vector<8x128xf32>
    %31 = arith.addf %3, %30 : vector<8x128xf32>
    %c1_i32 = arith.constant 1 : i32
    %c8_i32_10 = arith.constant 8 : i32
    %32 = arith.muli %c1_i32, %c8_i32_10 : i32
    %33 = tpu.assume_multiple %32, 8 : i32
    %34 = arith.index_cast %33 : i32 to index
    %c0_11 = arith.constant 0 : index
    %35 = vector.load %arg2[%34, %c0_11] : memref<16x128xf32, #tpu.memory_space<vmem>>, vector<8x128xf32>
    %36 = arith.index_cast %33 : i32 to index
    %c0_12 = arith.constant 0 : index
    %37 = vector.load %arg3[%36, %c0_12] : memref<16x128xf32, #tpu.memory_space<vmem>>, vector<8x128xf32>
    %cst_13 = arith.constant 0.000000e+00 : f32
    %38 = vector.broadcast %cst_13 : f32 to vector<8x128xf32>
    %39 = arith.maximumf %35, %38 : vector<8x128xf32>
    %cst_14 = arith.constant 0.000000e+00 : f32
    %40 = vector.broadcast %cst_14 : f32 to vector<8x128xf32>
    %41 = arith.maximumf %37, %40 : vector<8x128xf32>
    %42 = vector.shape_cast %39 : vector<8x128xf32> to vector<1x8x128xf32>
    %cst_15 = arith.constant dense<0.000000e+00> : vector<8x128xf32>
    %43 = vector.multi_reduction <add>, %42, %cst_15 [0] : vector<1x8x128xf32> to vector<8x128xf32>
    %44 = arith.addf %16, %43 : vector<8x128xf32>
    %45 = vector.shape_cast %41 : vector<8x128xf32> to vector<1x8x128xf32>
    %cst_16 = arith.constant dense<0.000000e+00> : vector<8x128xf32>
    %46 = vector.multi_reduction <add>, %45, %cst_16 [0] : vector<1x8x128xf32> to vector<8x128xf32>
    %47 = arith.addf %19, %46 : vector<8x128xf32>
    %48 = arith.mulf %39, %41 : vector<8x128xf32>
    %49 = vector.shape_cast %48 : vector<8x128xf32> to vector<1x8x128xf32>
    %cst_17 = arith.constant dense<0.000000e+00> : vector<8x128xf32>
    %50 = vector.multi_reduction <add>, %49, %cst_17 [0] : vector<1x8x128xf32> to vector<8x128xf32>
    %51 = arith.addf %23, %50 : vector<8x128xf32>
    %52 = arith.mulf %39, %39 : vector<8x128xf32>
    %53 = vector.shape_cast %52 : vector<8x128xf32> to vector<1x8x128xf32>
    %cst_18 = arith.constant dense<0.000000e+00> : vector<8x128xf32>
    %54 = vector.multi_reduction <add>, %53, %cst_18 [0] : vector<1x8x128xf32> to vector<8x128xf32>
    %55 = arith.addf %27, %54 : vector<8x128xf32>
    %56 = arith.mulf %41, %41 : vector<8x128xf32>
    %57 = vector.shape_cast %56 : vector<8x128xf32> to vector<1x8x128xf32>
    %cst_19 = arith.constant dense<0.000000e+00> : vector<8x128xf32>
    %58 = vector.multi_reduction <add>, %57, %cst_19 [0] : vector<1x8x128xf32> to vector<8x128xf32>
    %59 = arith.addf %31, %58 : vector<8x128xf32>
    %c2_i32 = arith.constant 2 : i32
    %c0_20 = arith.constant 0 : index
    %c0_21 = arith.constant 0 : index
    %c0_22 = arith.constant 0 : index
    %60 = vector.load %arg4[%c0_20, %c0_21, %c0_22] : memref<5x8x128xf32, #tpu.memory_space<vmem>>, vector<1x8x128xf32>
    %61 = vector.shape_cast %60 : vector<1x8x128xf32> to vector<8x128xf32>
    %62 = arith.addf %61, %44 : vector<8x128xf32>
    %c0_23 = arith.constant 0 : index
    %c0_24 = arith.constant 0 : index
    %c0_25 = arith.constant 0 : index
    %63 = vector.load %arg4[%c0_23, %c0_24, %c0_25] : memref<5x8x128xf32, #tpu.memory_space<vmem>>, vector<1x8x128xf32>
    %64 = vector.shape_cast %63 : vector<1x8x128xf32> to vector<8x128xf32>
    %65 = vector.shape_cast %62 : vector<8x128xf32> to vector<1x8x128xf32>
    tpu.vector_store %arg4[%c0_23, %c0_24, %c0_25], %65 {strides = array<i32>} : memref<5x8x128xf32, #tpu.memory_space<vmem>>, vector<1x8x128xf32>,
    %c1 = arith.constant 1 : index
    %c0_26 = arith.constant 0 : index
    %c0_27 = arith.constant 0 : index
    %66 = vector.load %arg4[%c1, %c0_26, %c0_27] : memref<5x8x128xf32, #tpu.memory_space<vmem>>, vector<1x8x128xf32>
    %67 = vector.shape_cast %66 : vector<1x8x128xf32> to vector<8x128xf32>
    %68 = arith.addf %67, %47 : vector<8x128xf32>
    %c1_28 = arith.constant 1 : index
    %c0_29 = arith.constant 0 : index
    %c0_30 = arith.constant 0 : index
    %69 = vector.load %arg4[%c1_28, %c0_29, %c0_30] : memref<5x8x128xf32, #tpu.memory_space<vmem>>, vector<1x8x128xf32>
    %70 = vector.shape_cast %69 : vector<1x8x128xf32> to vector<8x128xf32>
    %71 = vector.shape_cast %68 : vector<8x128xf32> to vector<1x8x128xf32>
    tpu.vector_store %arg4[%c1_28, %c0_29, %c0_30], %71 {strides = array<i32>} : memref<5x8x128xf32, #tpu.memory_space<vmem>>, vector<1x8x128xf32>,
    %c2 = arith.constant 2 : index
    %c0_31 = arith.constant 0 : index
    %c0_32 = arith.constant 0 : index
    %72 = vector.load %arg4[%c2, %c0_31, %c0_32] : memref<5x8x128xf32, #tpu.memory_space<vmem>>, vector<1x8x128xf32>
    %73 = vector.shape_cast %72 : vector<1x8x128xf32> to vector<8x128xf32>
    %74 = arith.addf %73, %51 : vector<8x128xf32>
    %c2_33 = arith.constant 2 : index
    %c0_34 = arith.constant 0 : index
    %c0_35 = arith.constant 0 : index
    %75 = vector.load %arg4[%c2_33, %c0_34, %c0_35] : memref<5x8x128xf32, #tpu.memory_space<vmem>>, vector<1x8x128xf32>
    %76 = vector.shape_cast %75 : vector<1x8x128xf32> to vector<8x128xf32>
    %77 = vector.shape_cast %74 : vector<8x128xf32> to vector<1x8x128xf32>
    tpu.vector_store %arg4[%c2_33, %c0_34, %c0_35], %77 {strides = array<i32>} : memref<5x8x128xf32, #tpu.memory_space<vmem>>, vector<1x8x128xf32>,
    %c3 = arith.constant 3 : index
    %c0_36 = arith.constant 0 : index
    %c0_37 = arith.constant 0 : index
    %78 = vector.load %arg4[%c3, %c0_36, %c0_37] : memref<5x8x128xf32, #tpu.memory_space<vmem>>, vector<1x8x128xf32>
    %79 = vector.shape_cast %78 : vector<1x8x128xf32> to vector<8x128xf32>
    %80 = arith.addf %79, %55 : vector<8x128xf32>
    %c3_38 = arith.constant 3 : index
    %c0_39 = arith.constant 0 : index
    %c0_40 = arith.constant 0 : index
    %81 = vector.load %arg4[%c3_38, %c0_39, %c0_40] : memref<5x8x128xf32, #tpu.memory_space<vmem>>, vector<1x8x128xf32>
    %82 = vector.shape_cast %81 : vector<1x8x128xf32> to vector<8x128xf32>
    %83 = vector.shape_cast %80 : vector<8x128xf32> to vector<1x8x128xf32>
    tpu.vector_store %arg4[%c3_38, %c0_39, %c0_40], %83 {strides = array<i32>} : memref<5x8x128xf32, #tpu.memory_space<vmem>>, vector<1x8x128xf32>,
    %c4 = arith.constant 4 : index
    %c0_41 = arith.constant 0 : index
    %c0_42 = arith.constant 0 : index
    %84 = vector.load %arg4[%c4, %c0_41, %c0_42] : memref<5x8x128xf32, #tpu.memory_space<vmem>>, vector<1x8x128xf32>
    %85 = vector.shape_cast %84 : vector<1x8x128xf32> to vector<8x128xf32>
    %86 = arith.addf %85, %59 : vector<8x128xf32>
    %c4_43 = arith.constant 4 : index
    %c0_44 = arith.constant 0 : index
    %c0_45 = arith.constant 0 : index
    %87 = vector.load %arg4[%c4_43, %c0_44, %c0_45] : memref<5x8x128xf32, #tpu.memory_space<vmem>>, vector<1x8x128xf32>
    %88 = vector.shape_cast %87 : vector<1x8x128xf32> to vector<8x128xf32>
    %89 = vector.shape_cast %86 : vector<8x128xf32> to vector<1x8x128xf32>
    tpu.vector_store %arg4[%c4_43, %c0_44, %c0_45], %89 {strides = array<i32>} : memref<5x8x128xf32, #tpu.memory_space<vmem>>, vector<1x8x128xf32>,
    return
  }
  func.func @transform_0(%arg0: i32, %arg1: i32) -> (i32, i32) {
    %c1_i32 = arith.constant 1 : i32
    %0 = arith.muli %arg0, %c1_i32 : i32
    %1 = arith.addi %0, %arg1 : i32
    %c0_i32 = arith.constant 0 : i32
    %c0_i32_0 = arith.constant 0 : i32
    return %1, %c0_i32 : i32, i32
  }
  func.func @transform_1(%arg0: i32, %arg1: i32) -> (i32, i32) {
    %c1_i32 = arith.constant 1 : i32
    %0 = arith.muli %arg0, %c1_i32 : i32
    %1 = arith.addi %0, %arg1 : i32
    %c0_i32 = arith.constant 0 : i32
    %c0_i32_0 = arith.constant 0 : i32
    return %1, %c0_i32 : i32, i32
  }
  func.func @transform_2(%arg0: i32, %arg1: i32) -> (i32, i32, i32) {
    %c0_i32 = arith.constant 0 : i32
    %c0_i32_0 = arith.constant 0 : i32
    %c0_i32_1 = arith.constant 0 : i32
    return %arg0, %c0_i32, %c0_i32_0 : i32, i32, i32
  }
}

</mosaic_0001>

<llo_original>
// kernel: pemoq_loss.1
$region0: #{pemoq_loss.1}
  #allocation0 [shape = 'u32[]', space=smem, size = 0x4, offset = 0x4, fixed_abs, tag = 'smem constant byte address 0x4 - core index']
  #allocation1 [shape = 'u32[144,128]{1,0:T(1,128)}', space=vmem, size = 0x12000, scoped, tag = 'internal scratch']
  %s0 = inlined_call_operand.vmem [shape: f32[16,128], index: 0, kind: input, shape index: {}]
  %s1 = inlined_call_operand.vmem [shape: f32[16,128], index: 1, kind: input, shape index: {}]
  %s2 = inlined_call_operand.vmem [shape: f32[5,8,128], index: 2, kind: output, shape index: {}]
  %s3 = sld [smem:[#allocation0]]
  $region22: #{pemoq_loss.1} parent=0
    _
  %s5 = ssub.s32 1, %s3
  %s6 = scalar_select 0, %s5, %s3
  // Predicated region
  $region2: #{pemoq_loss.1} parent=0 // pred_check
    _
  $region3: #{pemoq_loss.1} parent=0 // pred_check_branch
    %8 = sbr.rel (0) target = $region5
  $region4: #{pemoq_loss.1} parent=0 // pred_region
    %s9 = sadd.s32 0, 0
    %s10 = smul.u32 2, %s9
    %p11 = scmp.lt.s32.totalorder %s10, 1
    %s12 = scalar_select %p11, %s10, 1
    %s13 = smul.addr %s12, 8
    %s14 = scalar_lea.vmem %s0, %s13
    %s15 = sadd.s32 0, 0
    %s16 = smul.u32 2, %s15
  $region5: #{pemoq_loss.1} parent=0 // pred_fallthru
    _
  // Predicated region
  $region6: #{pemoq_loss.1} parent=0 // pred_check
    _
  $region7: #{pemoq_loss.1} parent=0 // pred_check_branch
    %18 = sbr.rel (0) target = $region9
  $region8: #{pemoq_loss.1} parent=0 // pred_region
    %s19 = sadd.s32 0, 0
    %s20 = smul.u32 2, %s19
    %p21 = scmp.lt.s32.totalorder %s20, 1
    %s22 = scalar_select %p21, %s20, 1
    %s23 = smul.addr %s22, 8
    %s24 = scalar_lea.vmem %s1, %s23
    %s25 = sadd.s32 0, 0
    %s26 = smul.u32 2, %s25
  $region9: #{pemoq_loss.1} parent=0 // pred_fallthru
    _
  %s27 = sadd.s32 0, 0
  %s28 = smul.u32 2, %s27
  %p29 = scmp.lt.s32.totalorder %s28, 1
  %s30 = scalar_select %p29, %s28, 1
  %s31 = smul.addr %s30, 8
  %s32 = scalar_lea.vmem %s0, %s31
  %s33 = sadd.s32 0, 0
  %s34 = smul.u32 2, %s33
  %p35 = scmp.lt.s32.totalorder %s34, 1
  %s36 = scalar_select %p35, %s34, 1
  %s37 = smul.addr %s36, 8
  %s38 = scalar_lea.vmem %s1, %s37
  %s39 = sadd.s32 0, 0
  %s40 = smul.u32 2, %s39
  %p41 = scmp.lt.s32.totalorder %s40, 1
  %s42 = scalar_select %p41, %s40, 1
  %s43 = smul.addr %s42, 8
  %s44 = scalar_lea.vmem %s0, %s43
  %s45 = sadd.s32 0, 0
  %s46 = smul.u32 2, %s45
  %s47 = sadd.s32 0, 0
  %s48 = smul.u32 2, %s47
  %p49 = scmp.lt.s32.totalorder %s48, 1
  %s50 = scalar_select %p49, %s48, 1
  %s51 = smul.addr %s50, 8
  %s52 = scalar_lea.vmem %s1, %s51
  %s53 = sadd.s32 0, 0
  %s54 = smul.u32 2, %s53
  %p55 = scmp.eq.s32.totalorder 0, 0
  // Predicated region
  $region10: #{pemoq_loss.1} parent=0 // pred_check
    %p56 = pneg %p55
  $region11: #{pemoq_loss.1} parent=0 // pred_check_branch
    %58 = sbr.rel (%p56) target = $region13
  $region12: #{pemoq_loss.1} parent=0 // pred_region
    %59 = vst [vmem:[%s2] sm:$0xff] 0.0
    %60 = vst [vmem:[%s2 + $0x8] sm:$0xff] 0.0
    %61 = vst [vmem:[%s2 + $0x10] sm:$0xff] 0.0
    %62 = vst [vmem:[%s2 + $0x18] sm:$0xff] 0.0
    %63 = vst [vmem:[%s2 + $0x20] sm:$0xff] 0.0
  $region13: #{pemoq_loss.1} parent=0 // pred_fallthru
    _
  %v64 = vld [vmem:[%s44] sm:$0xff]
  %v65 = vld [vmem:[%s52] sm:$0xff]
  %v66 = vmax.f32 %v64, 0.0
  %v67 = vmax.f32 %v65, 0.0
  %v68 = vadd.f32 %v66, 0.0
  %v69 = vadd.f32 %v68, 0.0
  %v70 = vadd.f32 %v67, 0.0
  %v71 = vadd.f32 %v70, 0.0
  %v72 = vmul.f32 %v66, %v67
  %v73 = vadd.f32 %v72, 0.0
  %v74 = vadd.f32 %v73, 0.0
  %v75 = vmul.f32 %v66, %v66
  %v76 = vadd.f32 %v75, 0.0
  %v77 = vadd.f32 %v76, 0.0
  %v78 = vmul.f32 %v67, %v67
  %v79 = vadd.f32 %v78, 0.0
  %v80 = vadd.f32 %v79, 0.0
  %s81 = scalar_lea.vmem %s44, 8
  %v82 = vld [vmem:[%s81] sm:$0xff]
  %s83 = scalar_lea.vmem %s52, 8
  %v84 = vld [vmem:[%s83] sm:$0xff]
  %v85 = vmax.f32 %v82, 0.0
  %v86 = vmax.f32 %v84, 0.0
  %v87 = vadd.f32 %v85, 0.0
  %v88 = vadd.f32 %v69, %v87
  %v89 = vadd.f32 %v86, 0.0
  %v90 = vadd.f32 %v71, %v89
  %v91 = vmul.f32 %v85, %v86
  %v92 = vadd.f32 %v91, 0.0
  %v93 = vadd.f32 %v74, %v92
  %v94 = vmul.f32 %v85, %v85
  %v95 = vadd.f32 %v94, 0.0
  %v96 = vadd.f32 %v77, %v95
  %v97 = vmul.f32 %v86, %v86
  %v98 = vadd.f32 %v97, 0.0
  %v99 = vadd.f32 %v80, %v98
  %v100 = vld [vmem:[%s2] sm:$0xff]
  %v101 = vadd.f32 %v100, %v88
  %102 = vst [vmem:[%s2] sm:$0xff] %v101
  %s103 = scalar_lea.vmem %s2, 8
  %v104 = vld [vmem:[%s103] sm:$0xff]
  %v105 = vadd.f32 %v104, %v90
  %106 = vst [vmem:[%s103] sm:$0xff] %v105
  %s107 = scalar_lea.vmem %s2, 16
  %v108 = vld [vmem:[%s107] sm:$0xff]
  %v109 = vadd.f32 %v108, %v93
  %110 = vst [vmem:[%s107] sm:$0xff] %v109
  %s111 = scalar_lea.vmem %s2, 24
  %v112 = vld [vmem:[%s111] sm:$0xff]
  %v113 = vadd.f32 %v112, %v96
  %114 = vst [vmem:[%s111] sm:$0xff] %v113
  %s115 = scalar_lea.vmem %s2, 32
  %v116 = vld [vmem:[%s115] sm:$0xff]
  %v117 = vadd.f32 %v116, %v99
  %118 = vst [vmem:[%s115] sm:$0xff] %v117
  // Predicated region
  $region14: #{pemoq_loss.1} parent=0 // pred_check
    _
  $region15: #{pemoq_loss.1} parent=0 // pred_check_branch
    %120 = sbr.rel (0) target = $region17
  $region16: #{pemoq_loss.1} parent=0 // pred_region
    _
  $region17: #{pemoq_loss.1} parent=0 // pred_fallthru
    _
  // Predicated region
  $region18: #{pemoq_loss.1} parent=0 // pred_check
    _
  $region19: #{pemoq_loss.1} parent=0 // pred_check_branch
    %122 = sbr.rel (0) target = $region21
  $region20: #{pemoq_loss.1} parent=0 // pred_region
    _
  $region21: #{pemoq_loss.1} parent=0 // pred_fallthru
    _

</llo_original>
